<compile_context>
chip_gen: v5e
topology: v5e:2x2
jax: 0.10.0
libtpu: 0.0.40
codegen_flags: <defaults>
</compile_context>

<pallas_src>
import functools

import jax
import jax.numpy as jnp
from jax import lax
from jax.experimental import pallas as pl
from jax.experimental.pallas import tpu as pltpu

_LANE = 128
_UNROLL_LIMIT = 8          # fully unroll the channel loops for C <= this


def _kwinners_kernel(x_ref, o_ref, *, k: int, count_dtype):
    """Block shape: (1, C, TS, 128); spatial plane is dense regardless of C."""
    C = x_ref.shape[1]
    plane_shape = (x_ref.shape[2], x_ref.shape[3])
    neg = jnp.asarray(-jnp.inf, dtype=x_ref.dtype)

    if C <= _UNROLL_LIMIT:
        # Small C: static unroll.  Live state is just cnt + thr planes.
        thr = jnp.full(plane_shape, -jnp.inf, dtype=x_ref.dtype)
        for c in range(C):
            xc = x_ref[0, c]
            cnt = jnp.zeros(plane_shape, count_dtype)
            for c2 in range(C):
                cnt = cnt + (x_ref[0, c2] >= xc).astype(count_dtype)
            thr = jnp.maximum(thr, jnp.where(cnt >= k, xc, neg))
        for c in range(C):
            xc = x_ref[0, c]
            o_ref[0, c] = jnp.where(xc < thr, jnp.zeros_like(xc), xc)
    else:
        # Large C: bounded-unroll loops keep code size and vreg live ranges
        # (one cnt plane + one thr plane) in check.
        def outer(c, thr):
            xc = x_ref[0, c]

            def inner(c2, cnt):
                return cnt + (x_ref[0, c2] >= xc).astype(count_dtype)

            cnt = lax.fori_loop(0, C, inner,
                                jnp.zeros(plane_shape, count_dtype), unroll=8)
            return jnp.maximum(thr, jnp.where(cnt >= k, xc, neg))

        thr = lax.fori_loop(0, C, outer,
                            jnp.full(plane_shape, -jnp.inf, dtype=x_ref.dtype))

        def writer(c, carry):
            xc = x_ref[0, c]
            o_ref[0, c] = jnp.where(xc < thr, jnp.zeros_like(xc), xc)
            return carry

        lax.fori_loop(0, C, writer, 0)


def _vmem_inflight_budget_bytes() -> int:
    """Per-generation budget for in-flight pipeline buffers + temporaries."""
    try:
        cap = int(pltpu.get_tpu_info().vmem_capacity_bytes)
    except Exception:            # query unavailable -> be conservative
        cap = 64 * 1024 * 1024   # v7x per-TensorCore VMEM
    # ~1/5 of physical VMEM, capped at 24 MiB so the 32 MiB scoped limit is
    # comfortable on every generation (v5e/v6e 128 MiB, v7x 64 MiB per TC).
    return min(cap // 5, 24 * 1024 * 1024)


def _has_bf16_valu() -> bool:
    """bf16 VALU exists on v6e / v7x; v5e and older emulate bf16 adds."""
    try:
        kind = jax.devices()[0].device_kind.lower()
    except Exception:
        return False
    return ("v6" in kind) or ("v7" in kind)


def kwinners2d(x: jax.Array, k: int) -> jax.Array:
    """x: (N, C, H, W) float array (NCHW, like the PyTorch module)."""
    N, C, H, W = x.shape
    assert 1 <= k <= C, "k must be in [1, C]"
    HW = H * W
    itemsize = jnp.dtype(x.dtype).itemsize

    # --- layout: (N, C, S, 128); pad only if HW is not a multiple of 128 ----
    hw128 = pl.cdiv(HW, _LANE) * _LANE
    x_flat = x.reshape(N, C, HW)
    padded = hw128 != HW
    if padded:
        # TODO(synk): replace this pad/slice with a masked 3-D (N, C, HW)
        # partial-block path to avoid two full-tensor HBM copies for
        # non-128-aligned spatial sizes.
        x_flat = jnp.pad(x_flat, ((0, 0), (0, 0), (0, hw128 - HW)))
    S = hw128 // _LANE
    x4 = x_flat.reshape(N, C, S, _LANE)

    # --- spatial tile: ~1-4 MiB input blocks from the per-gen VMEM budget ---
    budget = _vmem_inflight_budget_bytes()
    block_target = max(budget // 6, 512 * 1024)    # bytes per input block
    gran = 16 if itemsize == 2 else 8              # bf16 native (16,128) tile
    ts_target = block_target // (C * _LANE * itemsize)
    TS = max(gran, (ts_target // gran) * gran)
    if TS >= S:
        TS = S                                     # single spatial tile
    elif N * pl.cdiv(S, TS) < 2 and S >= 2 * gran:
        # Make sure both TensorCores (v7x megacore) get at least one program.
        TS = max(gran, ((S // 2) // gran) * gran)

    # bf16 counts halve VALU/vreg cost of the O(C^2) accumulation on v6e/v7x;
    # exact only up to 256 and strictly slower on v5e (no bf16 VALU).
    count_dtype = jnp.bfloat16 if (_has_bf16_valu() and C <= 256) else jnp.float32

    grid = (N, pl.cdiv(S, TS))
    cost = pl.CostEstimate(
        flops=2 * N * C * C * HW,                  # O(C^2) compares+adds / px
        transcendentals=0,
        bytes_accessed=2 * N * C * HW * itemsize)

    out4 = pl.pallas_call(
        functools.partial(_kwinners_kernel, k=k, count_dtype=count_dtype),
        out_shape=jax.ShapeDtypeStruct((N, C, S, _LANE), x.dtype),
        grid_spec=pltpu.PrefetchScalarGridSpec(
            num_scalar_prefetch=0,
            grid=grid,
            in_specs=[pl.BlockSpec((1, C, TS, _LANE),
                                   lambda n, s: (n, 0, s, 0))],
            out_specs=pl.BlockSpec((1, C, TS, _LANE),
                                   lambda n, s: (n, 0, s, 0)),
        ),
        compiler_params=pltpu.CompilerParams(
            dimension_semantics=("parallel", "parallel"),
            vmem_limit_bytes=32 * 1024 * 1024),
        cost_estimate=cost,
    )(x4)

    out_flat = out4.reshape(N, C, hw128)
    if padded:
        out_flat = out_flat[:, :, :HW]
    return out_flat.reshape(N, C, H, W)


def _reference(x: jax.Array, k: int) -> jax.Array:
    # Pure-JAX reference mirroring torch.kthvalue(C - k + 1, dim=1) semantics.
    C = x.shape[1]
    thr = jnp.sort(x, axis=1)[:, C - k:C - k + 1, :, :]
    return jnp.where(x < thr, jnp.zeros_like(x), x)


if __name__ == "__main__":
    key = jax.random.PRNGKey(0)
    N, C, H, W = 2, 4, 16, 16
    k = 2
    x = jax.random.normal(key, (N, C, H, W), dtype=jnp.float32)

    out = jax.block_until_ready(kwinners2d(x, k))
    ref = _reference(x, k)

    assert out.shape == x.shape and out.dtype == x.dtype
    assert jnp.allclose(out, ref), "mismatch vs reference"
    print("KERNEL_OK")
</pallas_src>

<mosaic_0001>
module attributes {stable_mosaic.version = 11 : i64} {
  func.func @_kwinners_kernel(%arg0: i32, %arg1: i32, %arg2: memref<1x4x2x128xf32, #tpu.memory_space<vmem>>, %arg3: memref<1x4x2x128xf32, #tpu.memory_space<vmem>>) attributes {dimension_semantics = [#tpu.dimension_semantics<parallel>, #tpu.dimension_semantics<parallel>], iteration_bounds = array<i64: 2, 1>, scalar_prefetch = 0 : i64, scratch_operands = 0 : i64, tpu.core_type = #tpu.core_type<tc>, window_params = [{transform_indices = @transform_0, window_bounds = array<i64: 1, 4, 2, 128>}, {transform_indices = @transform_1, window_bounds = array<i64: 1, 4, 2, 128>}]} {
    %cst = arith.constant 0xFF800000 : f32
    %0 = vector.broadcast %cst : f32 to vector<2x128xf32>
    %c0 = arith.constant 0 : index
    %c0_0 = arith.constant 0 : index
    %c0_1 = arith.constant 0 : index
    %c0_2 = arith.constant 0 : index
    %1 = vector.load %arg2[%c0, %c0_0, %c0_1, %c0_2] : memref<1x4x2x128xf32, #tpu.memory_space<vmem>>, vector<1x1x2x128xf32>
    %2 = vector.shape_cast %1 : vector<1x1x2x128xf32> to vector<2x128xf32>
    %cst_3 = arith.constant 0.000000e+00 : f32
    %3 = vector.broadcast %cst_3 : f32 to vector<2x128xf32>
    %c0_4 = arith.constant 0 : index
    %c0_5 = arith.constant 0 : index
    %c0_6 = arith.constant 0 : index
    %c0_7 = arith.constant 0 : index
    %4 = vector.load %arg2[%c0_4, %c0_5, %c0_6, %c0_7] : memref<1x4x2x128xf32, #tpu.memory_space<vmem>>, vector<1x1x2x128xf32>
    %5 = vector.shape_cast %4 : vector<1x1x2x128xf32> to vector<2x128xf32>
    %6 = arith.cmpf oge, %5, %2 : vector<2x128xf32>
    %7 = arith.extui %6 : vector<2x128xi1> to vector<2x128xi32>
    %8 = arith.sitofp %7 : vector<2x128xi32> to vector<2x128xf32>
    %9 = arith.addf %3, %8 : vector<2x128xf32>
    %c0_8 = arith.constant 0 : index
    %c1 = arith.constant 1 : index
    %c0_9 = arith.constant 0 : index
    %c0_10 = arith.constant 0 : index
    %10 = vector.load %arg2[%c0_8, %c1, %c0_9, %c0_10] : memref<1x4x2x128xf32, #tpu.memory_space<vmem>>, vector<1x1x2x128xf32>
    %11 = vector.shape_cast %10 : vector<1x1x2x128xf32> to vector<2x128xf32>
    %12 = arith.cmpf oge, %11, %2 : vector<2x128xf32>
    %13 = arith.extui %12 : vector<2x128xi1> to vector<2x128xi32>
    %14 = arith.sitofp %13 : vector<2x128xi32> to vector<2x128xf32>
    %15 = arith.addf %9, %14 : vector<2x128xf32>
    %c0_11 = arith.constant 0 : index
    %c2 = arith.constant 2 : index
    %c0_12 = arith.constant 0 : index
    %c0_13 = arith.constant 0 : index
    %16 = vector.load %arg2[%c0_11, %c2, %c0_12, %c0_13] : memref<1x4x2x128xf32, #tpu.memory_space<vmem>>, vector<1x1x2x128xf32>
    %17 = vector.shape_cast %16 : vector<1x1x2x128xf32> to vector<2x128xf32>
    %18 = arith.cmpf oge, %17, %2 : vector<2x128xf32>
    %19 = arith.extui %18 : vector<2x128xi1> to vector<2x128xi32>
    %20 = arith.sitofp %19 : vector<2x128xi32> to vector<2x128xf32>
    %21 = arith.addf %15, %20 : vector<2x128xf32>
    %c0_14 = arith.constant 0 : index
    %c3 = arith.constant 3 : index
    %c0_15 = arith.constant 0 : index
    %c0_16 = arith.constant 0 : index
    %22 = vector.load %arg2[%c0_14, %c3, %c0_15, %c0_16] : memref<1x4x2x128xf32, #tpu.memory_space<vmem>>, vector<1x1x2x128xf32>
    %23 = vector.shape_cast %22 : vector<1x1x2x128xf32> to vector<2x128xf32>
    %24 = arith.cmpf oge, %23, %2 : vector<2x128xf32>
    %25 = arith.extui %24 : vector<2x128xi1> to vector<2x128xi32>
    %26 = arith.sitofp %25 : vector<2x128xi32> to vector<2x128xf32>
    %27 = arith.addf %21, %26 : vector<2x128xf32>
    %cst_17 = arith.constant 2.000000e+00 : f32
    %28 = vector.broadcast %cst_17 : f32 to vector<2x128xf32>
    %29 = arith.cmpf oge, %27, %28 : vector<2x128xf32>
    %cst_18 = arith.constant 0xFF800000 : f32
    %30 = vector.broadcast %cst_18 : f32 to vector<2x128xf32>
    %31 = arith.select %29, %2, %30 : vector<2x128xi1>, vector<2x128xf32>
    %32 = arith.maximumf %0, %31 : vector<2x128xf32>
    %c0_19 = arith.constant 0 : index
    %c1_20 = arith.constant 1 : index
    %c0_21 = arith.constant 0 : index
    %c0_22 = arith.constant 0 : index
    %33 = vector.load %arg2[%c0_19, %c1_20, %c0_21, %c0_22] : memref<1x4x2x128xf32, #tpu.memory_space<vmem>>, vector<1x1x2x128xf32>
    %34 = vector.shape_cast %33 : vector<1x1x2x128xf32> to vector<2x128xf32>
    %cst_23 = arith.constant 0.000000e+00 : f32
    %35 = vector.broadcast %cst_23 : f32 to vector<2x128xf32>
    %c0_24 = arith.constant 0 : index
    %c0_25 = arith.constant 0 : index
    %c0_26 = arith.constant 0 : index
    %c0_27 = arith.constant 0 : index
    %36 = vector.load %arg2[%c0_24, %c0_25, %c0_26, %c0_27] : memref<1x4x2x128xf32, #tpu.memory_space<vmem>>, vector<1x1x2x128xf32>
    %37 = vector.shape_cast %36 : vector<1x1x2x128xf32> to vector<2x128xf32>
    %38 = arith.cmpf oge, %37, %34 : vector<2x128xf32>
    %39 = arith.extui %38 : vector<2x128xi1> to vector<2x128xi32>
    %40 = arith.sitofp %39 : vector<2x128xi32> to vector<2x128xf32>
    %41 = arith.addf %35, %40 : vector<2x128xf32>
    %c0_28 = arith.constant 0 : index
    %c1_29 = arith.constant 1 : index
    %c0_30 = arith.constant 0 : index
    %c0_31 = arith.constant 0 : index
    %42 = vector.load %arg2[%c0_28, %c1_29, %c0_30, %c0_31] : memref<1x4x2x128xf32, #tpu.memory_space<vmem>>, vector<1x1x2x128xf32>
    %43 = vector.shape_cast %42 : vector<1x1x2x128xf32> to vector<2x128xf32>
    %44 = arith.cmpf oge, %43, %34 : vector<2x128xf32>
    %45 = arith.extui %44 : vector<2x128xi1> to vector<2x128xi32>
    %46 = arith.sitofp %45 : vector<2x128xi32> to vector<2x128xf32>
    %47 = arith.addf %41, %46 : vector<2x128xf32>
    %c0_32 = arith.constant 0 : index
    %c2_33 = arith.constant 2 : index
    %c0_34 = arith.constant 0 : index
    %c0_35 = arith.constant 0 : index
    %48 = vector.load %arg2[%c0_32, %c2_33, %c0_34, %c0_35] : memref<1x4x2x128xf32, #tpu.memory_space<vmem>>, vector<1x1x2x128xf32>
    %49 = vector.shape_cast %48 : vector<1x1x2x128xf32> to vector<2x128xf32>
    %50 = arith.cmpf oge, %49, %34 : vector<2x128xf32>
    %51 = arith.extui %50 : vector<2x128xi1> to vector<2x128xi32>
    %52 = arith.sitofp %51 : vector<2x128xi32> to vector<2x128xf32>
    %53 = arith.addf %47, %52 : vector<2x128xf32>
    %c0_36 = arith.constant 0 : index
    %c3_37 = arith.constant 3 : index
    %c0_38 = arith.constant 0 : index
    %c0_39 = arith.constant 0 : index
    %54 = vector.load %arg2[%c0_36, %c3_37, %c0_38, %c0_39] : memref<1x4x2x128xf32, #tpu.memory_space<vmem>>, vector<1x1x2x128xf32>
    %55 = vector.shape_cast %54 : vector<1x1x2x128xf32> to vector<2x128xf32>
    %56 = arith.cmpf oge, %55, %34 : vector<2x128xf32>
    %57 = arith.extui %56 : vector<2x128xi1> to vector<2x128xi32>
    %58 = arith.sitofp %57 : vector<2x128xi32> to vector<2x128xf32>
    %59 = arith.addf %53, %58 : vector<2x128xf32>
    %cst_40 = arith.constant 2.000000e+00 : f32
    %60 = vector.broadcast %cst_40 : f32 to vector<2x128xf32>
    %61 = arith.cmpf oge, %59, %60 : vector<2x128xf32>
    %cst_41 = arith.constant 0xFF800000 : f32
    %62 = vector.broadcast %cst_41 : f32 to vector<2x128xf32>
    %63 = arith.select %61, %34, %62 : vector<2x128xi1>, vector<2x128xf32>
    %64 = arith.maximumf %32, %63 : vector<2x128xf32>
    %c0_42 = arith.constant 0 : index
    %c2_43 = arith.constant 2 : index
    %c0_44 = arith.constant 0 : index
    %c0_45 = arith.constant 0 : index
    %65 = vector.load %arg2[%c0_42, %c2_43, %c0_44, %c0_45] : memref<1x4x2x128xf32, #tpu.memory_space<vmem>>, vector<1x1x2x128xf32>
    %66 = vector.shape_cast %65 : vector<1x1x2x128xf32> to vector<2x128xf32>
    %cst_46 = arith.constant 0.000000e+00 : f32
    %67 = vector.broadcast %cst_46 : f32 to vector<2x128xf32>
    %c0_47 = arith.constant 0 : index
    %c0_48 = arith.constant 0 : index
    %c0_49 = arith.constant 0 : index
    %c0_50 = arith.constant 0 : index
    %68 = vector.load %arg2[%c0_47, %c0_48, %c0_49, %c0_50] : memref<1x4x2x128xf32, #tpu.memory_space<vmem>>, vector<1x1x2x128xf32>
    %69 = vector.shape_cast %68 : vector<1x1x2x128xf32> to vector<2x128xf32>
    %70 = arith.cmpf oge, %69, %66 : vector<2x128xf32>
    %71 = arith.extui %70 : vector<2x128xi1> to vector<2x128xi32>
    %72 = arith.sitofp %71 : vector<2x128xi32> to vector<2x128xf32>
    %73 = arith.addf %67, %72 : vector<2x128xf32>
    %c0_51 = arith.constant 0 : index
    %c1_52 = arith.constant 1 : index
    %c0_53 = arith.constant 0 : index
    %c0_54 = arith.constant 0 : index
    %74 = vector.load %arg2[%c0_51, %c1_52, %c0_53, %c0_54] : memref<1x4x2x128xf32, #tpu.memory_space<vmem>>, vector<1x1x2x128xf32>
    %75 = vector.shape_cast %74 : vector<1x1x2x128xf32> to vector<2x128xf32>
    %76 = arith.cmpf oge, %75, %66 : vector<2x128xf32>
    %77 = arith.extui %76 : vector<2x128xi1> to vector<2x128xi32>
    %78 = arith.sitofp %77 : vector<2x128xi32> to vector<2x128xf32>
    %79 = arith.addf %73, %78 : vector<2x128xf32>
    %c0_55 = arith.constant 0 : index
    %c2_56 = arith.constant 2 : index
    %c0_57 = arith.constant 0 : index
    %c0_58 = arith.constant 0 : index
    %80 = vector.load %arg2[%c0_55, %c2_56, %c0_57, %c0_58] : memref<1x4x2x128xf32, #tpu.memory_space<vmem>>, vector<1x1x2x128xf32>
    %81 = vector.shape_cast %80 : vector<1x1x2x128xf32> to vector<2x128xf32>
    %82 = arith.cmpf oge, %81, %66 : vector<2x128xf32>
    %83 = arith.extui %82 : vector<2x128xi1> to vector<2x128xi32>
    %84 = arith.sitofp %83 : vector<2x128xi32> to vector<2x128xf32>
    %85 = arith.addf %79, %84 : vector<2x128xf32>
    %c0_59 = arith.constant 0 : index
    %c3_60 = arith.constant 3 : index
    %c0_61 = arith.constant 0 : index
    %c0_62 = arith.constant 0 : index
    %86 = vector.load %arg2[%c0_59, %c3_60, %c0_61, %c0_62] : memref<1x4x2x128xf32, #tpu.memory_space<vmem>>, vector<1x1x2x128xf32>
    %87 = vector.shape_cast %86 : vector<1x1x2x128xf32> to vector<2x128xf32>
    %88 = arith.cmpf oge, %87, %66 : vector<2x128xf32>
    %89 = arith.extui %88 : vector<2x128xi1> to vector<2x128xi32>
    %90 = arith.sitofp %89 : vector<2x128xi32> to vector<2x128xf32>
    %91 = arith.addf %85, %90 : vector<2x128xf32>
    %cst_63 = arith.constant 2.000000e+00 : f32
    %92 = vector.broadcast %cst_63 : f32 to vector<2x128xf32>
    %93 = arith.cmpf oge, %91, %92 : vector<2x128xf32>
    %cst_64 = arith.constant 0xFF800000 : f32
    %94 = vector.broadcast %cst_64 : f32 to vector<2x128xf32>
    %95 = arith.select %93, %66, %94 : vector<2x128xi1>, vector<2x128xf32>
    %96 = arith.maximumf %64, %95 : vector<2x128xf32>
    %c0_65 = arith.constant 0 : index
    %c3_66 = arith.constant 3 : index
    %c0_67 = arith.constant 0 : index
    %c0_68 = arith.constant 0 : index
    %97 = vector.load %arg2[%c0_65, %c3_66, %c0_67, %c0_68] : memref<1x4x2x128xf32, #tpu.memory_space<vmem>>, vector<1x1x2x128xf32>
    %98 = vector.shape_cast %97 : vector<1x1x2x128xf32> to vector<2x128xf32>
    %cst_69 = arith.constant 0.000000e+00 : f32
    %99 = vector.broadcast %cst_69 : f32 to vector<2x128xf32>
    %c0_70 = arith.constant 0 : index
    %c0_71 = arith.constant 0 : index
    %c0_72 = arith.constant 0 : index
    %c0_73 = arith.constant 0 : index
    %100 = vector.load %arg2[%c0_70, %c0_71, %c0_72, %c0_73] : memref<1x4x2x128xf32, #tpu.memory_space<vmem>>, vector<1x1x2x128xf32>
    %101 = vector.shape_cast %100 : vector<1x1x2x128xf32> to vector<2x128xf32>
    %102 = arith.cmpf oge, %101, %98 : vector<2x128xf32>
    %103 = arith.extui %102 : vector<2x128xi1> to vector<2x128xi32>
    %104 = arith.sitofp %103 : vector<2x128xi32> to vector<2x128xf32>
    %105 = arith.addf %99, %104 : vector<2x128xf32>
    %c0_74 = arith.constant 0 : index
    %c1_75 = arith.constant 1 : index
    %c0_76 = arith.constant 0 : index
    %c0_77 = arith.constant 0 : index
    %106 = vector.load %arg2[%c0_74, %c1_75, %c0_76, %c0_77] : memref<1x4x2x128xf32, #tpu.memory_space<vmem>>, vector<1x1x2x128xf32>
    %107 = vector.shape_cast %106 : vector<1x1x2x128xf32> to vector<2x128xf32>
    %108 = arith.cmpf oge, %107, %98 : vector<2x128xf32>
    %109 = arith.extui %108 : vector<2x128xi1> to vector<2x128xi32>
    %110 = arith.sitofp %109 : vector<2x128xi32> to vector<2x128xf32>
    %111 = arith.addf %105, %110 : vector<2x128xf32>
    %c0_78 = arith.constant 0 : index
    %c2_79 = arith.constant 2 : index
    %c0_80 = arith.constant 0 : index
    %c0_81 = arith.constant 0 : index
    %112 = vector.load %arg2[%c0_78, %c2_79, %c0_80, %c0_81] : memref<1x4x2x128xf32, #tpu.memory_space<vmem>>, vector<1x1x2x128xf32>
    %113 = vector.shape_cast %112 : vector<1x1x2x128xf32> to vector<2x128xf32>
    %114 = arith.cmpf oge, %113, %98 : vector<2x128xf32>
    %115 = arith.extui %114 : vector<2x128xi1> to vector<2x128xi32>
    %116 = arith.sitofp %115 : vector<2x128xi32> to vector<2x128xf32>
    %117 = arith.addf %111, %116 : vector<2x128xf32>
    %c0_82 = arith.constant 0 : index
    %c3_83 = arith.constant 3 : index
    %c0_84 = arith.constant 0 : index
    %c0_85 = arith.constant 0 : index
    %118 = vector.load %arg2[%c0_82, %c3_83, %c0_84, %c0_85] : memref<1x4x2x128xf32, #tpu.memory_space<vmem>>, vector<1x1x2x128xf32>
    %119 = vector.shape_cast %118 : vector<1x1x2x128xf32> to vector<2x128xf32>
    %120 = arith.cmpf oge, %119, %98 : vector<2x128xf32>
    %121 = arith.extui %120 : vector<2x128xi1> to vector<2x128xi32>
    %122 = arith.sitofp %121 : vector<2x128xi32> to vector<2x128xf32>
    %123 = arith.addf %117, %122 : vector<2x128xf32>
    %cst_86 = arith.constant 2.000000e+00 : f32
    %124 = vector.broadcast %cst_86 : f32 to vector<2x128xf32>
    %125 = arith.cmpf oge, %123, %124 : vector<2x128xf32>
    %cst_87 = arith.constant 0xFF800000 : f32
    %126 = vector.broadcast %cst_87 : f32 to vector<2x128xf32>
    %127 = arith.select %125, %98, %126 : vector<2x128xi1>, vector<2x128xf32>
    %128 = arith.maximumf %96, %127 : vector<2x128xf32>
    %c0_88 = arith.constant 0 : index
    %c0_89 = arith.constant 0 : index
    %c0_90 = arith.constant 0 : index
    %c0_91 = arith.constant 0 : index
    %129 = vector.load %arg2[%c0_88, %c0_89, %c0_90, %c0_91] : memref<1x4x2x128xf32, #tpu.memory_space<vmem>>, vector<1x1x2x128xf32>
    %130 = vector.shape_cast %129 : vector<1x1x2x128xf32> to vector<2x128xf32>
    %131 = arith.cmpf olt, %130, %128 : vector<2x128xf32>
    %cst_92 = arith.constant 0.000000e+00 : f32
    %132 = vector.broadcast %cst_92 : f32 to vector<2x128xf32>
    %133 = arith.select %131, %132, %130 : vector<2x128xi1>, vector<2x128xf32>
    %c0_93 = arith.constant 0 : index
    %c0_94 = arith.constant 0 : index
    %c0_95 = arith.constant 0 : index
    %c0_96 = arith.constant 0 : index
    %134 = vector.load %arg3[%c0_93, %c0_94, %c0_95, %c0_96] : memref<1x4x2x128xf32, #tpu.memory_space<vmem>>, vector<1x1x2x128xf32>
    %135 = vector.shape_cast %134 : vector<1x1x2x128xf32> to vector<2x128xf32>
    %136 = vector.shape_cast %133 : vector<2x128xf32> to vector<1x1x2x128xf32>
    tpu.vector_store %arg3[%c0_93, %c0_94, %c0_95, %c0_96], %136 {strides = array<i32>} : memref<1x4x2x128xf32, #tpu.memory_space<vmem>>, vector<1x1x2x128xf32>,
    %c0_97 = arith.constant 0 : index
    %c1_98 = arith.constant 1 : index
    %c0_99 = arith.constant 0 : index
    %c0_100 = arith.constant 0 : index
    %137 = vector.load %arg2[%c0_97, %c1_98, %c0_99, %c0_100] : memref<1x4x2x128xf32, #tpu.memory_space<vmem>>, vector<1x1x2x128xf32>
    %138 = vector.shape_cast %137 : vector<1x1x2x128xf32> to vector<2x128xf32>
    %139 = arith.cmpf olt, %138, %128 : vector<2x128xf32>
    %cst_101 = arith.constant 0.000000e+00 : f32
    %140 = vector.broadcast %cst_101 : f32 to vector<2x128xf32>
    %141 = arith.select %139, %140, %138 : vector<2x128xi1>, vector<2x128xf32>
    %c0_102 = arith.constant 0 : index
    %c1_103 = arith.constant 1 : index
    %c0_104 = arith.constant 0 : index
    %c0_105 = arith.constant 0 : index
    %142 = vector.load %arg3[%c0_102, %c1_103, %c0_104, %c0_105] : memref<1x4x2x128xf32, #tpu.memory_space<vmem>>, vector<1x1x2x128xf32>
    %143 = vector.shape_cast %142 : vector<1x1x2x128xf32> to vector<2x128xf32>
    %144 = vector.shape_cast %141 : vector<2x128xf32> to vector<1x1x2x128xf32>
    tpu.vector_store %arg3[%c0_102, %c1_103, %c0_104, %c0_105], %144 {strides = array<i32>} : memref<1x4x2x128xf32, #tpu.memory_space<vmem>>, vector<1x1x2x128xf32>,
    %c0_106 = arith.constant 0 : index
    %c2_107 = arith.constant 2 : index
    %c0_108 = arith.constant 0 : index
    %c0_109 = arith.constant 0 : index
    %145 = vector.load %arg2[%c0_106, %c2_107, %c0_108, %c0_109] : memref<1x4x2x128xf32, #tpu.memory_space<vmem>>, vector<1x1x2x128xf32>
    %146 = vector.shape_cast %145 : vector<1x1x2x128xf32> to vector<2x128xf32>
    %147 = arith.cmpf olt, %146, %128 : vector<2x128xf32>
    %cst_110 = arith.constant 0.000000e+00 : f32
    %148 = vector.broadcast %cst_110 : f32 to vector<2x128xf32>
    %149 = arith.select %147, %148, %146 : vector<2x128xi1>, vector<2x128xf32>
    %c0_111 = arith.constant 0 : index
    %c2_112 = arith.constant 2 : index
    %c0_113 = arith.constant 0 : index
    %c0_114 = arith.constant 0 : index
    %150 = vector.load %arg3[%c0_111, %c2_112, %c0_113, %c0_114] : memref<1x4x2x128xf32, #tpu.memory_space<vmem>>, vector<1x1x2x128xf32>
    %151 = vector.shape_cast %150 : vector<1x1x2x128xf32> to vector<2x128xf32>
    %152 = vector.shape_cast %149 : vector<2x128xf32> to vector<1x1x2x128xf32>
    tpu.vector_store %arg3[%c0_111, %c2_112, %c0_113, %c0_114], %152 {strides = array<i32>} : memref<1x4x2x128xf32, #tpu.memory_space<vmem>>, vector<1x1x2x128xf32>,
    %c0_115 = arith.constant 0 : index
    %c3_116 = arith.constant 3 : index
    %c0_117 = arith.constant 0 : index
    %c0_118 = arith.constant 0 : index
    %153 = vector.load %arg2[%c0_115, %c3_116, %c0_117, %c0_118] : memref<1x4x2x128xf32, #tpu.memory_space<vmem>>, vector<1x1x2x128xf32>
    %154 = vector.shape_cast %153 : vector<1x1x2x128xf32> to vector<2x128xf32>
    %155 = arith.cmpf olt, %154, %128 : vector<2x128xf32>
    %cst_119 = arith.constant 0.000000e+00 : f32
    %156 = vector.broadcast %cst_119 : f32 to vector<2x128xf32>
    %157 = arith.select %155, %156, %154 : vector<2x128xi1>, vector<2x128xf32>
    %c0_120 = arith.constant 0 : index
    %c3_121 = arith.constant 3 : index
    %c0_122 = arith.constant 0 : index
    %c0_123 = arith.constant 0 : index
    %158 = vector.load %arg3[%c0_120, %c3_121, %c0_122, %c0_123] : memref<1x4x2x128xf32, #tpu.memory_space<vmem>>, vector<1x1x2x128xf32>
    %159 = vector.shape_cast %158 : vector<1x1x2x128xf32> to vector<2x128xf32>
    %160 = vector.shape_cast %157 : vector<2x128xf32> to vector<1x1x2x128xf32>
    tpu.vector_store %arg3[%c0_120, %c3_121, %c0_122, %c0_123], %160 {strides = array<i32>} : memref<1x4x2x128xf32, #tpu.memory_space<vmem>>, vector<1x1x2x128xf32>,
    return
  }
  func.func @transform_0(%arg0: i32, %arg1: i32) -> (i32, i32, i32, i32) {
    %c0_i32 = arith.constant 0 : i32
    %c0_i32_0 = arith.constant 0 : i32
    %c0_i32_1 = arith.constant 0 : i32
    return %arg0, %c0_i32, %arg1, %c0_i32_0 : i32, i32, i32, i32
  }
  func.func @transform_1(%arg0: i32, %arg1: i32) -> (i32, i32, i32, i32) {
    %c0_i32 = arith.constant 0 : i32
    %c0_i32_0 = arith.constant 0 : i32
    %c0_i32_1 = arith.constant 0 : i32
    return %arg0, %c0_i32, %arg1, %c0_i32_0 : i32, i32, i32, i32
  }
}

</mosaic_0001>

<llo_original>
// kernel: tpu_custom_call.1
$region0: #{tpu_custom_call.1}
  #allocation0 [shape = 'u32[]', space=smem, size = 0x4, offset = 0x4, fixed_abs, tag = 'smem constant byte address 0x4 - core index']
  #allocation1 [shape = 'u32[72,128]{1,0:T(1,128)}', space=vmem, size = 0x9000, scoped, tag = 'internal scratch']
  %s0 = inlined_call_operand.hbm [shape: f32[2,4,2,128], index: 0, kind: input, shape index: {}]
  %s1 = inlined_call_operand.hbm [shape: f32[2,4,2,128], index: 1, kind: output, shape index: {}]
  %s2 = sld [smem:[#allocation0]]
  $region41: #{tpu_custom_call.1} parent=0
    _
  %s4 = ssub.s32 1, %s2
  %s5 = scalar_select 0, %s4, %s2
  $region1: #{tpu_custom_call.1} parent=0
    #allocation2 [shape = 'u8[8192]{0}', space=vmem, size = 0x2000, scoped, tag = 'input window, operand 0']
    #allocation3 [shape = 's32[2]{0}', space=sflag, size = 0x8, scoped, tag = 'scoped memory for tpu_custom_call.1']
    #allocation4 [shape = 's32[2]{0}', space=sflag, size = 0x8, scoped, tag = 'scoped memory for tpu_custom_call.1']
    #allocation5 [shape = 'u8[8192]{0}', space=vmem, size = 0x2000, scoped, tag = 'output window, operand 0']
    %6 = vsyncpa [#allocation3], 0
    %s7 = scalar_lea.sflag [#allocation3], 1
    %8 = vsyncpa %s7, 0
    %9 = vsyncpa [#allocation4], 0
    %s10 = scalar_lea.sflag [#allocation4], 1
    %11 = vsyncpa %s10, 0
    loop: start=0, step=1, limit=4
    $region2: #{tpu_custom_call.1} parent=1 // loop_pre_header
      _
    $region3: #{tpu_custom_call.1} parent=1 // loop_header
      %s13 = sphi 0, %s17
      %p14 = scmp.ge.s32.totalorder %s13, 4
      %s20 = sphi 0, %s32
      %s21 = sphi 0, %s28
      %s22 = sphi 0, %s20
      %s23 = sphi 0, %s21
      %s24 = sphi 0, %s22
      %s25 = sphi 0, %s23
      %s37 = sphi 0, %s39
      %s40 = sphi 0, %s37
      %s41 = sphi 0, %s40
      %s57 = sphi 0, %s41
      %s65 = sphi 0, %s67
      %s68 = sphi 0, %s65
      %s69 = sphi 0, %s68
      %s85 = sphi 0, %s69
    $region4: #{tpu_custom_call.1} parent=1 // loop_header_branch
      %16 = sbr.rel (%p14) target = $region8
    $region5: #{tpu_custom_call.1} parent=1 // loop_body
      %s18 = ssub.s32 %s13, 1
      %s19 = ssub.s32 %s13, 2
      %s26 = sadd.s32 1, %s21
      %p27 = scmp.ge.s32.totalorder %s26, 1
      %s28 = scalar_select %p27, 0, %s26
      %s29 = sadd.s32 1, %s20
      %s30 = scalar_select %p27, %s29, %s20
      %p31 = scmp.ge.s32.totalorder %s30, 2
      %s32 = scalar_select %p31, 0, %s30
      %s33 = ssub.s32 %s20, %s32
      %s34 = ssub.s32 %s21, %s28
      %s35 = sor.u32 %s33, %s34
      %p36 = scmp.eq.s32.totalorder %s35, 0
      %s38 = sadd.s32 %s37, 1
      %s39 = scalar_select %p36, %s37, %s38
      %p42 = pneg %p36
      %p43 = scmp.eq.s32.totalorder %s13, 1
      %p44 = por %p42, %p43
      %p45 = scmp.ne.s32.totalorder %s37, %s40
      %p46 = scmp.eq.s32.totalorder %s13, 0
      %p47 = por %p45, %p46
      %p48 = scmp.ne.s32.totalorder %s37, %s40
      %p49 = scmp.eq.s32.totalorder %s18, 1
      %p50 = por %p48, %p49
      %p51 = scmp.ne.s32.totalorder %s40, %s41
      %p52 = scmp.eq.s32.totalorder %s18, 0
      %p53 = por %p51, %p52
      %p54 = scmp.ne.s32.totalorder %s40, %s41
      %p55 = scmp.eq.s32.totalorder %s19, 1
      %p56 = por %p54, %p55
      %p58 = scmp.ne.s32.totalorder %s41, %s57
      %p59 = scmp.eq.s32.totalorder %s19, 0
      %p60 = por %p58, %p59
      %s61 = ssub.s32 %s20, %s32
      %s62 = ssub.s32 %s21, %s28
      %s63 = sor.u32 %s61, %s62
      %p64 = scmp.eq.s32.totalorder %s63, 0
      %s66 = sadd.s32 %s65, 1
      %s67 = scalar_select %p64, %s65, %s66
      %p70 = pneg %p64
      %p71 = scmp.eq.s32.totalorder %s13, 1
      %p72 = por %p70, %p71
      %p73 = scmp.ne.s32.totalorder %s65, %s68
      %p74 = scmp.eq.s32.totalorder %s13, 0
      %p75 = por %p73, %p74
      %p76 = scmp.ne.s32.totalorder %s65, %s68
      %p77 = scmp.eq.s32.totalorder %s18, 1
      %p78 = por %p76, %p77
      %p79 = scmp.ne.s32.totalorder %s68, %s69
      %p80 = scmp.eq.s32.totalorder %s18, 0
      %p81 = por %p79, %p80
      %p82 = scmp.ne.s32.totalorder %s68, %s69
      %p83 = scmp.eq.s32.totalorder %s19, 1
      %p84 = por %p82, %p83
      %p86 = scmp.ne.s32.totalorder %s69, %s85
      %p87 = scmp.eq.s32.totalorder %s19, 0
      %p88 = por %p86, %p87
      %p89 = scmp.le.s32.totalorder 1, %s13
      %p90 = scmp.lt.s32.totalorder %s13, 3
      %p91 = pnand %p89, %p90
      %p92 = pneg %p91
      // Predicated region
      $region9: #{tpu_custom_call.1} parent=5 // pred_check
        _
      $region10: #{tpu_custom_call.1} parent=5 // pred_check_branch
        %94 = sbr.rel (%p91) target = $region12
      $region11: #{tpu_custom_call.1} parent=5 // pred_region
        %s95 = ssub.s32 %s13, 1
      $region12: #{tpu_custom_call.1} parent=5 // pred_fallthru
        _
      %p96 = scmp.lt.s32.totalorder %s13, 2
      // Predicated region
      $region13: #{tpu_custom_call.1} parent=5 // pred_check
        %p97 = pneg %p96
      $region14: #{tpu_custom_call.1} parent=5 // pred_check_branch
        %99 = sbr.rel (%p97) target = $region16
      $region15: #{tpu_custom_call.1} parent=5 // pred_region
        // Predicated region
        $region17: #{tpu_custom_call.1} parent=15 // pred_check
          %p100 = pneg %p47
        $region18: #{tpu_custom_call.1} parent=15 // pred_check_branch
          %102 = sbr.rel (%p100) target = $region20
        $region19: #{tpu_custom_call.1} parent=15 // pred_region
          %s103 = sand.u32 %s37, 1
          %s104 = scalar_lea.sflag [#allocation3], %s103
          %s105 = sand.u32 %s37, 1
          %s106 = smul.addr %s105, 8
          %s107 = scalar_lea.vmem [#allocation2], %s106
          %109 = vsyncadd %s104, 0
          %s110 = smul.addr %s20, 4
          %s111 = sadd.s32 %s21, %s110
          %s112 = smul.addr %s111, 2
          %s113 = scalar_lea.hbm %s0, %s112
          %s114 = sshll.u32 %s113, 4
          %s115 = int_to_ptr.hbm [resolvable:$true] %s114
          %s116 = sshll.u32 %s107, 4
          %s117 = int_to_ptr.vmem [resolvable:$true] %s116
          %122 = dma.hbm_to_vmem [thread:$0]  %s115, 128, %s117, %s104, 32, 32, 2
        $region20: #{tpu_custom_call.1} parent=15 // pred_fallthru
          _
      $region16: #{tpu_custom_call.1} parent=5 // pred_fallthru
        _
      %p123 = scmp.le.s32.totalorder 1, %s13
      %p124 = scmp.lt.s32.totalorder %s13, 3
      %p125 = pnand %p123, %p124
      %p126 = pneg %p125
      // Predicated region
      $region21: #{tpu_custom_call.1} parent=5 // pred_check
        _
      $region22: #{tpu_custom_call.1} parent=5 // pred_check_branch
        %128 = sbr.rel (%p125) target = $region24
      $region23: #{tpu_custom_call.1} parent=5 // pred_region
        %s129 = ssub.s32 %s13, 1
        %s130 = sand.u32 %s40, 1
        %s131 = scalar_lea.sflag [#allocation3], %s130
        %s132 = sand.u32 %s40, 1
        %s133 = smul.addr %s132, 8
        %s134 = scalar_lea.vmem [#allocation2], %s133
        // Predicated region
        $region25: #{tpu_custom_call.1} parent=23 // pred_check
          %p135 = pneg %p53
        $region26: #{tpu_custom_call.1} parent=23 // pred_check_branch
          %137 = sbr.rel (%p135) target = $region28
        $region27: #{tpu_custom_call.1} parent=23 // pred_region
          %139 = dma.done %s131, 128
        $region28: #{tpu_custom_call.1} parent=23 // pred_fallthru
          _
        %s140 = sand.u32 %s40, 1
        %s141 = scalar_lea.sflag [#allocation3], %s140
        %s142 = sand.u32 %s40, 1
        %s143 = smul.addr %s142, 8
        %s144 = scalar_lea.vmem [#allocation2], %s143
        %p145 = pneg %p53
        %p146 = pneg %p50
        %p147 = pneg %p81
        %p148 = pneg %p78
        %s149 = sand.u32 %s68, 1
        %s150 = scalar_lea.sflag [#allocation4], %s149
        %s151 = sand.u32 %s68, 1
        %s152 = smul.addr %s151, 8
        %s153 = scalar_lea.vmem [#allocation5], %s152
        %v154 = vld [vmem:[%s134] sm:$0x3]
        %vm155 = vcmp.ge.f32.partialorder %v154, %v154
        %v156 = vsel %vm155, 1, 0
        %v157 = vcvt.s32.f32 %v156
        %v158 = vadd.f32 %v157, 0.0
        %s159 = scalar_lea.vmem %s134, 2 [#allocation2]
        %v160 = vld [vmem:[%s159] sm:$0x3]
        %vm161 = vcmp.ge.f32.partialorder %v160, %v154
        %v162 = vsel %vm161, 1, 0
        %v163 = vcvt.s32.f32 %v162
        %v164 = vadd.f32 %v158, %v163
        %s165 = scalar_lea.vmem %s134, 4 [#allocation2]
        %v166 = vld [vmem:[%s165] sm:$0x3]
        %vm167 = vcmp.ge.f32.partialorder %v166, %v154
        %v168 = vsel %vm167, 1, 0
        %v169 = vcvt.s32.f32 %v168
        %v170 = vadd.f32 %v164, %v169
        %s171 = scalar_lea.vmem %s134, 6 [#allocation2]
        %v172 = vld [vmem:[%s171] sm:$0x3]
        %vm173 = vcmp.ge.f32.partialorder %v172, %v154
        %v174 = vsel %vm173, 1, 0
        %v175 = vcvt.s32.f32 %v174
        %v176 = vadd.f32 %v170, %v175
        %vm177 = vcmp.ge.f32.partialorder %v176, 2.0
        %v178 = vsel %vm177, %v154, -inf
        %vm179 = vcmp.ge.f32.partialorder %v154, %v160
        %v180 = vsel %vm179, 1, 0
        %v181 = vcvt.s32.f32 %v180
        %v182 = vadd.f32 %v181, 0.0
        %vm183 = vcmp.ge.f32.partialorder %v160, %v160
        %v184 = vsel %vm183, 1, 0
        %v185 = vcvt.s32.f32 %v184
        %v186 = vadd.f32 %v182, %v185
        %vm187 = vcmp.ge.f32.partialorder %v166, %v160
        %v188 = vsel %vm187, 1, 0
        %v189 = vcvt.s32.f32 %v188
        %v190 = vadd.f32 %v186, %v189
        %vm191 = vcmp.ge.f32.partialorder %v172, %v160
        %v192 = vsel %vm191, 1, 0
        %v193 = vcvt.s32.f32 %v192
        %v194 = vadd.f32 %v190, %v193
        %vm195 = vcmp.ge.f32.partialorder %v194, 2.0
        %v196 = vsel %vm195, %v160, -inf
        %v197 = vmax.f32 %v178, %v196
        %vm198 = vcmp.ge.f32.partialorder %v154, %v166
        %v199 = vsel %vm198, 1, 0
        %v200 = vcvt.s32.f32 %v199
        %v201 = vadd.f32 %v200, 0.0
        %vm202 = vcmp.ge.f32.partialorder %v160, %v166
        %v203 = vsel %vm202, 1, 0
        %v204 = vcvt.s32.f32 %v203
        %v205 = vadd.f32 %v201, %v204
        %vm206 = vcmp.ge.f32.partialorder %v166, %v166
        %v207 = vsel %vm206, 1, 0
        %v208 = vcvt.s32.f32 %v207
        %v209 = vadd.f32 %v205, %v208
        %vm210 = vcmp.ge.f32.partialorder %v172, %v166
        %v211 = vsel %vm210, 1, 0
        %v212 = vcvt.s32.f32 %v211
        %v213 = vadd.f32 %v209, %v212
        %vm214 = vcmp.ge.f32.partialorder %v213, 2.0
        %v215 = vsel %vm214, %v166, -inf
        %v216 = vmax.f32 %v197, %v215
        %vm217 = vcmp.ge.f32.partialorder %v154, %v172
        %v218 = vsel %vm217, 1, 0
        %v219 = vcvt.s32.f32 %v218
        %v220 = vadd.f32 %v219, 0.0
        %vm221 = vcmp.ge.f32.partialorder %v160, %v172
        %v222 = vsel %vm221, 1, 0
        %v223 = vcvt.s32.f32 %v222
        %v224 = vadd.f32 %v220, %v223
        %vm225 = vcmp.ge.f32.partialorder %v166, %v172
        %v226 = vsel %vm225, 1, 0
        %v227 = vcvt.s32.f32 %v226
        %v228 = vadd.f32 %v224, %v227
        %vm229 = vcmp.ge.f32.partialorder %v172, %v172
        %v230 = vsel %vm229, 1, 0
        %v231 = vcvt.s32.f32 %v230
        %v232 = vadd.f32 %v228, %v231
        %vm233 = vcmp.ge.f32.partialorder %v232, 2.0
        %v234 = vsel %vm233, %v172, -inf
        %v235 = vmax.f32 %v216, %v234
        %vm236 = vcmp.lt.f32.partialorder %v154, %v235
        %v237 = vsel %vm236, 0.0, %v154
        %238 = vst [vmem:[%s153] sm:$0x3] %v237
        %v239 = vld [vmem:[%s159] sm:$0x3]
        %vm240 = vcmp.lt.f32.partialorder %v239, %v235
        %v241 = vsel %vm240, 0.0, %v239
        %s242 = scalar_lea.vmem %s153, 2 [#allocation5]
        %243 = vst [vmem:[%s242] sm:$0x3] %v241
        %v244 = vld [vmem:[%s165] sm:$0x3]
        %vm245 = vcmp.lt.f32.partialorder %v244, %v235
        %v246 = vsel %vm245, 0.0, %v244
        %s247 = scalar_lea.vmem %s153, 4 [#allocation5]
        %248 = vst [vmem:[%s247] sm:$0x3] %v246
        %v249 = vld [vmem:[%s171] sm:$0x3]
        %vm250 = vcmp.lt.f32.partialorder %v249, %v235
        %v251 = vsel %vm250, 0.0, %v249
        %s252 = scalar_lea.vmem %s153, 6 [#allocation5]
        %253 = vst [vmem:[%s252] sm:$0x3] %v251
        %s254 = sand.u32 %s68, 1
        %s255 = scalar_lea.sflag [#allocation4], %s254
        %s256 = sand.u32 %s68, 1
        %s257 = smul.addr %s256, 8
        %s258 = scalar_lea.vmem [#allocation5], %s257
        // Predicated region
        $region29: #{tpu_custom_call.1} parent=23 // pred_check
          %p259 = pneg %p78
        $region30: #{tpu_custom_call.1} parent=23 // pred_check_branch
          %261 = sbr.rel (%p259) target = $region32
        $region31: #{tpu_custom_call.1} parent=23 // pred_region
          %263 = vsyncadd %s255, 0
          %s264 = smul.addr %s22, 4
          %s265 = sadd.s32 %s23, %s264
          %s266 = smul.addr %s265, 2
          %s267 = scalar_lea.hbm %s1, %s266
          %s268 = sshll.u32 %s258, 4
          %s269 = int_to_ptr.vmem [resolvable:$true] %s268
          %s270 = sshll.u32 %s267, 4
          %s271 = int_to_ptr.hbm [resolvable:$true] %s270
          %276 = dma.vmem_to_hbm [thread:$0]  %s269, 128, %s271, %s255, 32, 32, 2
        $region32: #{tpu_custom_call.1} parent=23 // pred_fallthru
          _
      $region24: #{tpu_custom_call.1} parent=5 // pred_fallthru
        _
      %p277 = scmp.le.s32.totalorder 2, %s13
      // Predicated region
      $region33: #{tpu_custom_call.1} parent=5 // pred_check
        %p278 = pneg %p277
      $region34: #{tpu_custom_call.1} parent=5 // pred_check_branch
        %280 = sbr.rel (%p278) target = $region36
      $region35: #{tpu_custom_call.1} parent=5 // pred_region
        %s281 = ssub.s32 %s13, 2
        // Predicated region
        $region37: #{tpu_custom_call.1} parent=35 // pred_check
          %p282 = pneg %p84
        $region38: #{tpu_custom_call.1} parent=35 // pred_check_branch
          %284 = sbr.rel (%p282) target = $region40
        $region39: #{tpu_custom_call.1} parent=35 // pred_region
          %s285 = sand.u32 %s69, 1
          %s286 = scalar_lea.sflag [#allocation4], %s285
          %s287 = sand.u32 %s69, 1
          %s288 = smul.addr %s287, 8
          %s289 = scalar_lea.vmem [#allocation5], %s288
          %291 = dma.done %s286, 128
        $region40: #{tpu_custom_call.1} parent=35 // pred_fallthru
          _
      $region36: #{tpu_custom_call.1} parent=5 // pred_fallthru
        _
    $region6: #{tpu_custom_call.1} parent=1 // loop_footer
      %s17 = sadd.s32 1, %s13
    $region7: #{tpu_custom_call.1} parent=1 // loop_footer_branch
      %12 = sbr.rel target = $region3
    $region8: #{tpu_custom_call.1} parent=1 // loop_exit
      _
    %292 = vsyncpa [#allocation3], 1
    %s293 = scalar_lea.sflag [#allocation3], 1
    %294 = vsyncpa %s293, 1
    %295 = vsyncpa [#allocation4], 1
    %s296 = scalar_lea.sflag [#allocation4], 1
    %297 = vsyncpa %s296, 1

</llo_original>
